<compile_context>
chip_gen: v7x
topology: tpu7x:2x2x1
jax: 0.10.0
libtpu: 0.0.40
codegen_flags: <defaults>
</compile_context>

<pallas_src>
import numpy as np
import jax
import jax.numpy as jnp
from jax import lax
from jax.experimental import pallas as pl
from jax.experimental.pallas import tpu as pltpu

NEG_SLOPE = 0.01          # torch.nn.LeakyReLU default negative_slope
LANE = 128


def _round_up(x, m):
    return (x + m - 1) // m * m


# ------------------------- VMEM budgeting helpers ---------------------------

def _tpu_vmem_capacity():
    try:
        return int(pltpu.get_tpu_info().vmem_capacity_bytes)
    except Exception:
        return 64 << 20            # conservative: v7x has 64 MiB per TensorCore


def _vmem_step_budget():
    # keep the double-buffered per-step footprint well under physical VMEM
    return int(min(24 << 20, _tpu_vmem_capacity() // 4))


def _vmem_limit(step_bytes):
    cap = _tpu_vmem_capacity()
    return int(min(max(2 * step_bytes, 32 << 20), (cap * 3) // 4))


# ----------------------------- conv kernel ----------------------------------

def _conv3x3s2_lrelu_kernel(cols_ref, w_ref, b_ref, o_ref):
    # cols: (1, TH*Wo, 9*Cin)   w: (9*Cin, Cp)   b: (1, Cp)   o: (TH*Wo, Cp)
    acc = jnp.dot(cols_ref[0], w_ref[...], preferred_element_type=jnp.float32)
    acc = acc + b_ref[...]
    acc = jnp.where(acc >= 0.0, acc, NEG_SLOPE * acc)          # LeakyReLU
    o_ref[...] = acc.astype(o_ref.dtype)                        # lane-dense store


def _pick_conv_row_tile(Ho, Wo, Kc, Cp, in_isz, budget):
    def step_bytes(th):
        rows = _round_up(th * Wo, 8)
        in_blk = rows * _round_up(Kc, LANE) * in_isz            # lane-padded in VMEM
        out_blk = rows * Cp * 4
        w_blk = _round_up(Kc, 8) * Cp * in_isz
        # 2x input (double buffer) + 2x output (double buffer) + 1x f32 accumulator
        return 2 * in_blk + 3 * out_blk + w_blk + (1 << 20)
    if Ho <= 8 or step_bytes(Ho) <= budget:
        return Ho, step_bytes(Ho)
    th = min((Ho // 8) * 8, 512)
    while th > 8 and step_bytes(th) > budget:
        th -= 8
    return th, step_bytes(th)


def conv3x3_s2_lrelu(x, weight, bias, *, channels_last=False,
                     compute_dtype=jnp.float32, out_dtype=jnp.float32):
    """Conv2d(kernel=3, stride=2, padding=1) + LeakyReLU as one im2col MXU matmul.

    x: (N, Cin, H, W) NCHW (default) or (N, H, W, Cin) if channels_last.
    Returns (slab, meta): slab is (Ho_pad*Wo, N*Cp), spatial-major with image n's
    channels at lanes [n*Cp, n*Cp+Cout).  Rows of the Ho..Ho_pad padding hold
    LeakyReLU(bias) (NOT zeros); they carry zero weight downstream and are sliced
    away before the module output.
    """
    if not channels_last:
        x = jnp.transpose(x, (0, 2, 3, 1))
    N, H, W, Cin = x.shape
    Cout = weight.shape[0]
    Ho = (H - 1) // 2 + 1
    Wo = (W - 1) // 2 + 1
    Cp = _round_up(Cout, LANE)                 # lane-dense output channels
    Kc = 9 * Cin                               # taps packed along the contraction dim
    in_isz = jnp.dtype(compute_dtype).itemsize

    TH, step_bytes = _pick_conv_row_tile(Ho, Wo, Kc, Cp, in_isz, _vmem_step_budget())
    n_rt = -(-Ho // TH)
    Ho_pad = n_rt * TH

    # stride-2 im2col: 9 taps concatenated along channels (K = 9*Cin).  XLA fuses the
    # transpose+pad+slice+concat into one pass over x.
    # TODO(synk): for large Cin switch to a stride-2 phase-slab decomposition so the
    # slab costs ~1x the input instead of 2.25x.
    xp = jnp.pad(x, ((0, 0), (1, 1), (1, 1), (0, 0)))
    taps = [xp[:, kh::2, kw::2, :][:, :Ho, :Wo, :]
            for kh in range(3) for kw in range(3)]
    cols = jnp.concatenate(taps, axis=-1)                                  # (N,Ho,Wo,Kc)
    cols = jnp.pad(cols, ((0, 0), (0, Ho_pad - Ho), (0, 0), (0, 0)))
    cols = cols.reshape(N, Ho_pad * Wo, Kc).astype(compute_dtype)

    # weight matrix (Kc, Cp): W[(kh*3+kw)*Cin + ci, co] = weight[co, ci, kh, kw]
    w_mat = weight.transpose(2, 3, 1, 0).reshape(Kc, Cout)
    w_mat = jnp.pad(w_mat, ((0, 0), (0, Cp - Cout))).astype(compute_dtype)
    b_pad = jnp.pad(bias.reshape(1, Cout), ((0, 0), (0, Cp - Cout))).astype(jnp.float32)

    flops = int(2 * N * Ho_pad * Wo * Kc * Cp)
    bytes_acc = int(cols.size * in_isz + w_mat.size * in_isz + b_pad.size * 4
                    + Ho_pad * Wo * N * Cp * jnp.dtype(out_dtype).itemsize)

    slab = pl.pallas_call(
        _conv3x3s2_lrelu_kernel,
        out_shape=jax.ShapeDtypeStruct((Ho_pad * Wo, N * Cp), out_dtype),
        grid=(N, n_rt),
        in_specs=[pl.BlockSpec((1, TH * Wo, Kc), lambda n, t: (n, t, 0)),
                  pl.BlockSpec((Kc, Cp), lambda n, t: (0, 0)),     # resident weights
                  pl.BlockSpec((1, Cp), lambda n, t: (0, 0))],     # resident bias
        out_specs=pl.BlockSpec((TH * Wo, Cp), lambda n, t: (t, n)),
        compiler_params=pltpu.CompilerParams(
            dimension_semantics=("parallel", "parallel"),          # megacore on v7x
            vmem_limit_bytes=_vmem_limit(step_bytes)),
        cost_estimate=pl.CostEstimate(flops=flops, transcendentals=0,
                                      bytes_accessed=bytes_acc),
    )(cols, w_mat, b_pad)
    return slab, (N, Cout, Ho, Ho_pad, Wo, Cp)


# --------------------------- bilinear kernel ---------------------------------

def _bilinear_matrix_np(src, dst):
    """F.interpolate(mode='bilinear', align_corners=False) 1-D weights, (dst, src)."""
    scale = src / dst
    d = np.arange(dst, dtype=np.float64)
    s = np.maximum(scale * (d + 0.5) - 0.5, 0.0)
    i0 = np.clip(np.floor(s).astype(np.int64), 0, src - 1)
    i1 = np.minimum(i0 + 1, src - 1)
    l1 = (s - i0).astype(np.float32)
    m = np.zeros((dst, src), np.float32)
    m[np.arange(dst), i0] += 1.0 - l1
    m[np.arange(dst), i1] += l1
    return m


def _bilinear_vmem_bytes(THt, THs, Ws, Wt, TB, x_isz):
    xb = THs * _round_up(Ws, 8) * TB * x_isz
    ob = Wt * _round_up(THt, 8) * TB * 4
    y = _round_up(THt, 8) * Ws * TB * 4
    y3 = _round_up(Ws, 8) * THt * TB * 4
    z = _round_up(Wt, 8) * THt * TB * 4
    mats = (_round_up(Wt, 8) * _round_up(Ws, LANE)
            + _round_up(THt, 8) * _round_up(THs, LANE)) * 4
    return 2 * xb + 2 * ob + y + y3 + z + mats + (1 << 20)


def _bilinear_hwb_kernel(x_ref, rh_ref, rw_ref, o_ref):
    # x: (THs, Ws, TB)  rh: (1, THt, THs)  rw: (Wt, Ws)  ->  o: (Wt, THt, TB)
    THs, Ws, TB = x_ref.shape
    Wt, THt, _ = o_ref.shape
    # row interpolation: one lane-dense 2-D MXU matmul over the source-row band
    y = jnp.dot(rh_ref[0], x_ref[...].reshape(THs, Ws * TB),
                preferred_element_type=jnp.float32)                      # (THt, Ws*TB)
    # column interpolation: bring Ws to the leading (contraction) axis, then matmul.
    # TODO(synk): make this block-local swap free (middle-axis contraction / W-major
    # conv slab); it is one extra pass over the small row-interp intermediate.
    y = y.reshape(THt, Ws, TB).transpose(1, 0, 2).reshape(Ws, THt * TB)
    z = jnp.dot(rw_ref[...], y, preferred_element_type=jnp.float32)      # (Wt, THt*TB)
    o_ref[...] = z.reshape(Wt, THt, TB).astype(o_ref.dtype)


def bilinear_resize_hwb(x_hwb, src_rows, tgt_size, *, out_dtype=jnp.float32):
    """Bilinear resize (align_corners=False) of an (Hs_pad, Ws, B) slab, B on lanes.

    Rows >= src_rows are padding and receive zero interpolation weight.
    Returns (Wt, Ht, B).
    """
    Hs_pad, Ws, B = x_hwb.shape
    Hs = int(src_rows)
    Ht, Wt = int(tgt_size[0]), int(tgt_size[1])
    assert B % LANE == 0
    TB = LANE                                   # >=2 grid steps; both v7x cores busy
    x_isz = jnp.dtype(x_hwb.dtype).itemsize
    budget = _vmem_step_budget()

    # Target-row tiling: with the integral >=2x downscale this module performs,
    # target tile k reads only source rows [k*THs, (k+1)*THs) -> narrow x bands.
    THt, THs_blk = Ht, Hs_pad
    use_bands = Hs % Ht == 0 and Hs // Ht >= 2
    if use_bands:
        s = Hs // Ht
        THt, THs_blk = Ht, Hs
        if Ht % 8 == 0:
            for cand in range(Ht, 7, -8):
                if Ht % cand:
                    continue
                if _bilinear_vmem_bytes(cand, s * cand, Ws, Wt, TB, x_isz) <= budget:
                    THt, THs_blk = cand, s * cand
                    break
            else:
                THt, THs_blk = 8, 8 * s
        if THt == Ht and B // TB < 2 and Ht % 16 == 0:
            THt, THs_blk = Ht // 2, s * (Ht // 2)          # keep >=2 grid steps
    n_ht = Ht // THt
    step_bytes = _bilinear_vmem_bytes(THt, THs_blk, Ws, Wt, TB, x_isz)
    # TODO(synk): also tile Ws/Wt for extremely wide frames or non-integral scales.

    rh = _bilinear_matrix_np(Hs, Ht)                                    # (Ht, Hs)
    if n_ht == 1:
        rh_t = np.zeros((1, Ht, THs_blk), np.float32)
        rh_t[0, :, :Hs] = rh
    else:
        rh_t = np.stack([rh[k * THt:(k + 1) * THt, k * THs_blk:(k + 1) * THs_blk]
                         for k in range(n_ht)])
        # all interpolation weight must live inside the diagonal source bands
        assert abs(float(rh.sum()) - float(rh_t.sum())) < 1e-4
    rw = _bilinear_matrix_np(Ws, Wt)                                    # (Wt, Ws)

    rh_t = jnp.asarray(rh_t, x_hwb.dtype)       # matches x on the MXU (bf16-capable)
    rw = jnp.asarray(rw, jnp.float32)

    flops = int(2 * B * (Ht * THs_blk * Ws + Wt * Ws * Ht))
    bytes_acc = int(n_ht * THs_blk * Ws * B * x_isz
                    + Wt * Ht * B * jnp.dtype(out_dtype).itemsize
                    + rh_t.size * x_isz + rw.size * 4)

    return pl.pallas_call(
        _bilinear_hwb_kernel,
        out_shape=jax.ShapeDtypeStruct((Wt, Ht, B), out_dtype),
        grid=(n_ht, B // TB),
        in_specs=[pl.BlockSpec((THs_blk, Ws, TB), lambda h, b: (h, 0, b)),
                  pl.BlockSpec((1, THt, THs_blk), lambda h, b: (h, 0, 0)),
                  pl.BlockSpec((Wt, Ws), lambda h, b: (0, 0))],
        out_specs=pl.BlockSpec((Wt, THt, TB), lambda h, b: (0, h, b)),
        compiler_params=pltpu.CompilerParams(
            dimension_semantics=("parallel", "parallel"),
            vmem_limit_bytes=_vmem_limit(step_bytes)),
        cost_estimate=pl.CostEstimate(flops=flops, transcendentals=0,
                                      bytes_accessed=bytes_acc),
    )(x_hwb, rh_t, rw)


# ------------------------- layout glue (interface) ---------------------------

def _slab_to_nchw(slab, N, C, Ho, Ho_pad, Wo, Cp):
    y = slab.reshape(Ho_pad, Wo, N, Cp)
    return jnp.transpose(y, (2, 3, 0, 1))[:, :C, :Ho, :]


def _whb_to_nchw(z_whb, N, C):
    Wt, Ht, NB = z_whb.shape
    Cp = NB // N
    return jnp.transpose(z_whb.reshape(Wt, Ht, N, Cp), (2, 3, 1, 0))[:, :C]


# --------------------------------- module ------------------------------------

def _init_conv(key, in_nc, out_nc):
    # mirrors PyTorch Conv2d default init: U(+-1/sqrt(fan_in))
    kw, kb = jax.random.split(key)
    bound = float((in_nc * 9) ** -0.5)
    w = jax.random.uniform(kw, (out_nc, in_nc, 3, 3), jnp.float32, -bound, bound)
    b = jax.random.uniform(kb, (out_nc,), jnp.float32, -bound, bound)
    return w, b


class DownsampleNet:
    """Pallas port of DownsampleNet (factor 2/4/8).  NCHW float32 in / out."""

    def __init__(self, input_nc, output_nc, org_size, tgt_size, key,
                 compute_dtype=jnp.float32):
        # compute_dtype=jnp.bfloat16 halves the HBM traffic of the inter-stage slabs
        # and doubles MXU rate on v6e/v7x; f32 accumulation is kept either way.
        factor_h = int(org_size[0] / tgt_size[0])
        factor_w = int(org_size[1] / tgt_size[1])
        assert factor_h == factor_w
        self.factor = factor_h
        self.tgt_size = (int(tgt_size[0]), int(tgt_size[1]))
        self.compute_dtype = compute_dtype
        k0, k1 = jax.random.split(key)
        self.w0, self.b0 = _init_conv(k0, input_nc, output_nc)
        if self.factor == 8:
            # mirrors the original module; shape-consistent only if input_nc == output_nc
            self.w1, self.b1 = _init_conv(k1, input_nc, output_nc)

    def __call__(self, x):
        cd = self.compute_dtype
        if self.factor == 2:
            slab, (N, C, Ho, Ho_pad, Wo, Cp) = conv3x3_s2_lrelu(
                x, self.w0, self.b0, compute_dtype=cd, out_dtype=jnp.float32)
            return _slab_to_nchw(slab, N, C, Ho, Ho_pad, Wo, Cp)
        if self.factor == 4:
            slab, (N, C, Ho, Ho_pad, Wo, Cp) = conv3x3_s2_lrelu(
                x, self.w0, self.b0, compute_dtype=cd, out_dtype=cd)
            z = bilinear_resize_hwb(slab.reshape(Ho_pad, Wo, N * Cp), Ho,
                                    self.tgt_size, out_dtype=jnp.float32)
            return _whb_to_nchw(z, N, C)
        if self.factor == 8:
            slab, (N, C, Ho, Ho_pad, Wo, Cp) = conv3x3_s2_lrelu(
                x, self.w0, self.b0, compute_dtype=cd, out_dtype=cd)
            z = bilinear_resize_hwb(slab.reshape(Ho_pad, Wo, N * Cp), Ho,
                                    self.tgt_size, out_dtype=cd)
            # feed the (Wt, Ht, N*Cp) slab to the second conv in NHWC: one relayout
            # instead of the previous NCHW round trip.
            Ht, Wt = self.tgt_size
            x2 = jnp.transpose(z.reshape(Wt, Ht, N, Cp), (2, 1, 0, 3))[..., :C]
            slab2, (N2, C2, Ho2, Ho2_pad, Wo2, Cp2) = conv3x3_s2_lrelu(
                x2, self.w1, self.b1, channels_last=True,
                compute_dtype=cd, out_dtype=jnp.float32)
            return _slab_to_nchw(slab2, N2, C2, Ho2, Ho2_pad, Wo2, Cp2)
        raise ValueError("unsupported factor (the reference module defines 2, 4, 8)")


# ------------------------------- demo / check --------------------------------

def _ref_conv_lrelu(x, w, b):
    y = lax.conv_general_dilated(
        x, w, window_strides=(2, 2), padding=((1, 1), (1, 1)),
        dimension_numbers=('NCHW', 'OIHW', 'NCHW'),
        precision=lax.Precision.HIGHEST)
    y = y + b[None, :, None, None]
    return jnp.where(y >= 0.0, y, NEG_SLOPE * y)


def _ref_bilinear(x, tgt):
    _, _, Hs, Ws = x.shape
    rh = jnp.asarray(_bilinear_matrix_np(Hs, int(tgt[0])))
    rw = jnp.asarray(_bilinear_matrix_np(Ws, int(tgt[1])))
    return jnp.einsum('th,nchw,vw->nctv', rh, x, rw, precision=lax.Precision.HIGHEST)


if __name__ == "__main__":
    key = jax.random.PRNGKey(0)
    kx, kp = jax.random.split(key)

    N, Cin, H, W = 2, 4, 16, 16
    Cout = 4
    x = jax.random.normal(kx, (N, Cin, H, W), dtype=jnp.float32)

    # factor 4: conv(s=2) + LeakyReLU -> bilinear to (4, 4)
    net4 = DownsampleNet(Cin, Cout, (H, W), (4, 4), kp)
    out4 = jax.block_until_ready(net4(x))
    ref4 = _ref_bilinear(_ref_conv_lrelu(x, net4.w0, net4.b0), (4, 4))
    assert out4.shape == (N, Cout, 4, 4), out4.shape
    assert float(jnp.abs(out4 - ref4).max()) < 1e-3

    # factor 2: conv(s=2) + LeakyReLU only
    net2 = DownsampleNet(Cin, Cout, (H, W), (8, 8), kp)
    out2 = jax.block_until_ready(net2(x))
    ref2 = _ref_conv_lrelu(x, net2.w0, net2.b0)
    assert out2.shape == (N, Cout, 8, 8), out2.shape
    assert float(jnp.abs(out2 - ref2).max()) < 1e-3

    # factor 8: conv -> bilinear -> conv (input_nc == output_nc as the module requires)
    net8 = DownsampleNet(Cin, Cout, (H, W), (2, 2), kp)
    out8 = jax.block_until_ready(net8(x))
    ref8 = _ref_conv_lrelu(
        _ref_bilinear(_ref_conv_lrelu(x, net8.w0, net8.b0), (2, 2)), net8.w1, net8.b1)
    assert out8.shape == (N, Cout, 1, 1), out8.shape
    assert float(jnp.abs(out8 - ref8).max()) < 1e-3

    print("KERNEL_OK")
</pallas_src>

<mosaic_0001>
module attributes {stable_mosaic.version = 11 : i64} {
  func.func @_conv3x3s2_lrelu_kernel(%arg0: i32, %arg1: i32, %arg2: memref<1x64x36xf32, #tpu.memory_space<vmem>>, %arg3: memref<36x128xf32, #tpu.memory_space<vmem>>, %arg4: memref<1x128xf32, #tpu.memory_space<vmem>>, %arg5: memref<64x128xf32, #tpu.memory_space<vmem>>) attributes {dimension_semantics = [#tpu.dimension_semantics<parallel>, #tpu.dimension_semantics<parallel>], iteration_bounds = array<i64: 2, 1>, scalar_prefetch = 0 : i64, scratch_operands = 0 : i64, tpu.core_type = #tpu.core_type<tc>, window_params = [{transform_indices = @transform_0, window_bounds = array<i64: 1, 64, 36>}, {pipeline_mode = #tpu.pipeline_mode<synchronous>, transform_indices = @transform_1, window_bounds = array<i64: 36, 128>}, {pipeline_mode = #tpu.pipeline_mode<synchronous>, transform_indices = @transform_2, window_bounds = array<i64: 1, 128>}, {transform_indices = @transform_3, window_bounds = array<i64: 64, 128>}]} {
    %c0 = arith.constant 0 : index
    %c0_0 = arith.constant 0 : index
    %c0_1 = arith.constant 0 : index
    %0 = vector.load %arg2[%c0, %c0_0, %c0_1] : memref<1x64x36xf32, #tpu.memory_space<vmem>>, vector<1x64x36xf32>
    %1 = vector.shape_cast %0 : vector<1x64x36xf32> to vector<64x36xf32>
    %c0_2 = arith.constant 0 : index
    %c0_3 = arith.constant 0 : index
    %2 = vector.load %arg3[%c0_2, %c0_3] : memref<36x128xf32, #tpu.memory_space<vmem>>, vector<36x128xf32>
    %cst = arith.constant dense<0.000000e+00> : vector<64x128xf32>
    %3 = tpu.matmul %1, %2, %cst {dimension_numbers = #tpu.dot_dimension_numbers<[1], [0], [0], [1], [0, 0, 1, 1], [], []>} : vector<64x36xf32>, vector<36x128xf32>, vector<64x128xf32> -> vector<64x128xf32>
    %c0_4 = arith.constant 0 : index
    %c0_5 = arith.constant 0 : index
    %4 = vector.load %arg4[%c0_4, %c0_5] : memref<1x128xf32, #tpu.memory_space<vmem>>, vector<1x128xf32>
    %5 = vector.broadcast %4 : vector<1x128xf32> to vector<64x128xf32>
    %6 = arith.addf %3, %5 : vector<64x128xf32>
    %cst_6 = arith.constant 0.000000e+00 : f32
    %7 = vector.broadcast %cst_6 : f32 to vector<64x128xf32>
    %8 = arith.cmpf oge, %6, %7 : vector<64x128xf32>
    %cst_7 = arith.constant 0.00999999977 : f32
    %9 = vector.broadcast %cst_7 : f32 to vector<64x128xf32>
    %10 = arith.mulf %9, %6 : vector<64x128xf32>
    %11 = arith.select %8, %6, %10 : vector<64x128xi1>, vector<64x128xf32>
    %c0_8 = arith.constant 0 : index
    %c0_9 = arith.constant 0 : index
    %12 = vector.load %arg5[%c0_8, %c0_9] : memref<64x128xf32, #tpu.memory_space<vmem>>, vector<64x128xf32>
    tpu.vector_store %arg5[%c0_8, %c0_9], %11 {strides = array<i32>} : memref<64x128xf32, #tpu.memory_space<vmem>>, vector<64x128xf32>,
    return
  }
  func.func @transform_0(%arg0: i32, %arg1: i32) -> (i32, i32, i32) {
    %c0_i32 = arith.constant 0 : i32
    %c0_i32_0 = arith.constant 0 : i32
    return %arg0, %arg1, %c0_i32 : i32, i32, i32
  }
  func.func @transform_1(%arg0: i32, %arg1: i32) -> (i32, i32) {
    %c0_i32 = arith.constant 0 : i32
    %c0_i32_0 = arith.constant 0 : i32
    %c0_i32_1 = arith.constant 0 : i32
    return %c0_i32, %c0_i32_0 : i32, i32
  }
  func.func @transform_2(%arg0: i32, %arg1: i32) -> (i32, i32) {
    %c0_i32 = arith.constant 0 : i32
    %c0_i32_0 = arith.constant 0 : i32
    %c0_i32_1 = arith.constant 0 : i32
    return %c0_i32, %c0_i32_0 : i32, i32
  }
  func.func @transform_3(%arg0: i32, %arg1: i32) -> (i32, i32) {
    %c0_i32 = arith.constant 0 : i32
    return %arg1, %arg0 : i32, i32
  }
}

</mosaic_0001>

<llo_original>
// kernel: tpu_custom_call.1
$region0: #{tpu_custom_call.1}
  #allocation0 [shape = 'u32[]', space=smem, size = 0x4, offset = 0x4, fixed_abs, tag = 'smem constant byte address 0x4 - core index']
  #allocation1 [shape = 'u32[144,128]{1,0:T(1,128)}', space=vmem, size = 0x12000, scoped, tag = 'internal scratch']
  %s0 = inlined_call_operand.vmem [shape: f32[2,64,36], index: 0, kind: input, shape index: {}]
  %s1 = inlined_call_operand.vmem [shape: f32[36,128], index: 1, kind: input, shape index: {}]
  %s2 = inlined_call_operand.vmem [shape: f32[1,128], index: 2, kind: input, shape index: {}]
  %s3 = inlined_call_operand.hbm [shape: f32[64,256], index: 3, kind: output, shape index: {}]
  %s4 = sld [smem:[#allocation0]]
  $region45: #{tpu_custom_call.1} parent=0
    _
  %s6 = ssub.s32 1, %s4
  %s7 = scalar_select 0, %s6, %s4
  $region1: #{tpu_custom_call.1} parent=0
    #allocation2 [shape = 'u8[65536]{0}', space=vmem, size = 0x10000, scoped, tag = 'output window, operand 0']
    #allocation3 [shape = 's32[2]{0}', space=sflag, size = 0x8, scoped, tag = 'scoped memory for tpu_custom_call.1']
    %8 = vsyncpa [#allocation3], 0
    %s9 = scalar_lea.sflag [#allocation3], 1
    %10 = vsyncpa %s9, 0
    loop: start=0, step=1, limit=4
    $region2: #{tpu_custom_call.1} parent=1 // loop_pre_header
      _
    $region3: #{tpu_custom_call.1} parent=1 // loop_header
      %s12 = sphi 0, %s16
      %p13 = scmp.ge.s32.totalorder %s12, 4
      %s19 = sphi 0, %s31
      %s20 = sphi 0, %s27
      %s21 = sphi 0, %s19
      %s22 = sphi 0, %s20
      %s23 = sphi 0, %s21
      %s24 = sphi 0, %s22
      %s36 = sphi 0, %s38
      %s39 = sphi 0, %s36
      %s40 = sphi 0, %s39
      %s56 = sphi 0, %s40
      %s60 = sphi 0, %s60
      %s62 = sphi 0, %s60
      %s63 = sphi 0, %s62
      %s77 = sphi 0, %s63
      %s81 = sphi 0, %s81
      %s83 = sphi 0, %s81
      %s84 = sphi 0, %s83
      %s98 = sphi 0, %s84
      %s106 = sphi 0, %s108
      %s109 = sphi 0, %s106
      %s110 = sphi 0, %s109
      %s126 = sphi 0, %s110
    $region4: #{tpu_custom_call.1} parent=1 // loop_header_branch
      %15 = sbr.rel (%p13) target = $region8
    $region5: #{tpu_custom_call.1} parent=1 // loop_body
      %s17 = ssub.s32 %s12, 1
      %s18 = ssub.s32 %s12, 2
      %s25 = sadd.s32 1, %s20
      %p26 = scmp.ge.s32.totalorder %s25, 1
      %s27 = scalar_select %p26, 0, %s25
      %s28 = sadd.s32 1, %s19
      %s29 = scalar_select %p26, %s28, %s19
      %p30 = scmp.ge.s32.totalorder %s29, 2
      %s31 = scalar_select %p30, 0, %s29
      %s32 = ssub.s32 %s19, %s31
      %s33 = ssub.s32 %s20, %s27
      %s34 = sor.u32 %s32, %s33
      %p35 = scmp.eq.s32.totalorder %s34, 0
      %s37 = sadd.s32 %s36, 1
      %s38 = scalar_select %p35, %s36, %s37
      %p41 = pneg %p35
      %p42 = scmp.eq.s32.totalorder %s12, 1
      %p43 = por %p41, %p42
      %p44 = scmp.ne.s32.totalorder %s36, %s39
      %p45 = scmp.eq.s32.totalorder %s12, 0
      %p46 = por %p44, %p45
      %p47 = scmp.ne.s32.totalorder %s36, %s39
      %p48 = scmp.eq.s32.totalorder %s17, 1
      %p49 = por %p47, %p48
      %p50 = scmp.ne.s32.totalorder %s39, %s40
      %p51 = scmp.eq.s32.totalorder %s17, 0
      %p52 = por %p50, %p51
      %p53 = scmp.ne.s32.totalorder %s39, %s40
      %p54 = scmp.eq.s32.totalorder %s18, 1
      %p55 = por %p53, %p54
      %p57 = scmp.ne.s32.totalorder %s40, %s56
      %p58 = scmp.eq.s32.totalorder %s18, 0
      %p59 = por %p57, %p58
      %s61 = sadd.s32 %s60, 1
      %p64 = scmp.eq.s32.totalorder %s12, 1
      %p65 = scmp.ne.s32.totalorder %s60, %s62
      %p66 = scmp.eq.s32.totalorder %s12, 0
      %p67 = por %p65, %p66
      %p68 = scmp.ne.s32.totalorder %s60, %s62
      %p69 = scmp.eq.s32.totalorder %s17, 1
      %p70 = por %p68, %p69
      %p71 = scmp.ne.s32.totalorder %s62, %s63
      %p72 = scmp.eq.s32.totalorder %s17, 0
      %p73 = por %p71, %p72
      %p74 = scmp.ne.s32.totalorder %s62, %s63
      %p75 = scmp.eq.s32.totalorder %s18, 1
      %p76 = por %p74, %p75
      %p78 = scmp.ne.s32.totalorder %s63, %s77
      %p79 = scmp.eq.s32.totalorder %s18, 0
      %p80 = por %p78, %p79
      %s82 = sadd.s32 %s81, 1
      %p85 = scmp.eq.s32.totalorder %s12, 1
      %p86 = scmp.ne.s32.totalorder %s81, %s83
      %p87 = scmp.eq.s32.totalorder %s12, 0
      %p88 = por %p86, %p87
      %p89 = scmp.ne.s32.totalorder %s81, %s83
      %p90 = scmp.eq.s32.totalorder %s17, 1
      %p91 = por %p89, %p90
      %p92 = scmp.ne.s32.totalorder %s83, %s84
      %p93 = scmp.eq.s32.totalorder %s17, 0
      %p94 = por %p92, %p93
      %p95 = scmp.ne.s32.totalorder %s83, %s84
      %p96 = scmp.eq.s32.totalorder %s18, 1
      %p97 = por %p95, %p96
      %p99 = scmp.ne.s32.totalorder %s84, %s98
      %p100 = scmp.eq.s32.totalorder %s18, 0
      %p101 = por %p99, %p100
      %s102 = ssub.s32 %s20, %s27
      %s103 = ssub.s32 %s19, %s31
      %s104 = sor.u32 %s102, %s103
      %p105 = scmp.eq.s32.totalorder %s104, 0
      %s107 = sadd.s32 %s106, 1
      %s108 = scalar_select %p105, %s106, %s107
      %p111 = pneg %p105
      %p112 = scmp.eq.s32.totalorder %s12, 1
      %p113 = por %p111, %p112
      %p114 = scmp.ne.s32.totalorder %s106, %s109
      %p115 = scmp.eq.s32.totalorder %s12, 0
      %p116 = por %p114, %p115
      %p117 = scmp.ne.s32.totalorder %s106, %s109
      %p118 = scmp.eq.s32.totalorder %s17, 1
      %p119 = por %p117, %p118
      %p120 = scmp.ne.s32.totalorder %s109, %s110
      %p121 = scmp.eq.s32.totalorder %s17, 0
      %p122 = por %p120, %p121
      %p123 = scmp.ne.s32.totalorder %s109, %s110
      %p124 = scmp.eq.s32.totalorder %s18, 1
      %p125 = por %p123, %p124
      %p127 = scmp.ne.s32.totalorder %s110, %s126
      %p128 = scmp.eq.s32.totalorder %s18, 0
      %p129 = por %p127, %p128
      %p130 = scmp.le.s32.totalorder 1, %s12
      %p131 = scmp.lt.s32.totalorder %s12, 3
      %p132 = pnand %p130, %p131
      %p133 = pneg %p132
      // Predicated region
      $region9: #{tpu_custom_call.1} parent=5 // pred_check
        _
      $region10: #{tpu_custom_call.1} parent=5 // pred_check_branch
        %135 = sbr.rel (%p132) target = $region12
      $region11: #{tpu_custom_call.1} parent=5 // pred_region
        %s136 = ssub.s32 %s12, 1
        // Predicated region
        $region13: #{tpu_custom_call.1} parent=11 // pred_check
          %p137 = pneg %p73
        $region14: #{tpu_custom_call.1} parent=11 // pred_check_branch
          %139 = sbr.rel (%p137) target = $region16
        $region15: #{tpu_custom_call.1} parent=11 // pred_region
          _
        $region16: #{tpu_custom_call.1} parent=11 // pred_fallthru
          _
        // Predicated region
        $region17: #{tpu_custom_call.1} parent=11 // pred_check
          %p140 = pneg %p94
        $region18: #{tpu_custom_call.1} parent=11 // pred_check_branch
          %142 = sbr.rel (%p140) target = $region20
        $region19: #{tpu_custom_call.1} parent=11 // pred_region
          _
        $region20: #{tpu_custom_call.1} parent=11 // pred_fallthru
          _
      $region12: #{tpu_custom_call.1} parent=5 // pred_fallthru
        _
      %p143 = scmp.lt.s32.totalorder %s12, 2
      // Predicated region
      $region21: #{tpu_custom_call.1} parent=5 // pred_check
        %p144 = pneg %p143
      $region22: #{tpu_custom_call.1} parent=5 // pred_check_branch
        %146 = sbr.rel (%p144) target = $region24
      $region23: #{tpu_custom_call.1} parent=5 // pred_region
        // Predicated region
        $region25: #{tpu_custom_call.1} parent=23 // pred_check
          %p147 = pneg %p46
        $region26: #{tpu_custom_call.1} parent=23 // pred_check_branch
          %149 = sbr.rel (%p147) target = $region28
        $region27: #{tpu_custom_call.1} parent=23 // pred_region
          %s150 = smul.u32 8, %s20
          %p151 = scmp.lt.s32.totalorder %s19, 1
          %s152 = scalar_select %p151, %s19, 1
          %p153 = scmp.lt.s32.totalorder %s150, 7
          %s154 = scalar_select %p153, %s150, 7
          %s155 = smul.addr %s152, 8
          %s156 = sadd.s32 %s154, %s155
          %s157 = smul.addr %s156, 8
          %s158 = scalar_lea.vmem %s0, %s157
          %s159 = smul.u32 8, %s20
        $region28: #{tpu_custom_call.1} parent=23 // pred_fallthru
          _
      $region24: #{tpu_custom_call.1} parent=5 // pred_fallthru
        _
      %p160 = scmp.le.s32.totalorder 1, %s12
      %p161 = scmp.lt.s32.totalorder %s12, 3
      %p162 = pnand %p160, %p161
      %p163 = pneg %p162
      // Predicated region
      $region29: #{tpu_custom_call.1} parent=5 // pred_check
        _
      $region30: #{tpu_custom_call.1} parent=5 // pred_check_branch
        %165 = sbr.rel (%p162) target = $region32
      $region31: #{tpu_custom_call.1} parent=5 // pred_region
        %s166 = ssub.s32 %s12, 1
        %s167 = smul.u32 8, %s22
        %p168 = scmp.lt.s32.totalorder %s21, 1
        %s169 = scalar_select %p168, %s21, 1
        %p170 = scmp.lt.s32.totalorder %s167, 7
        %s171 = scalar_select %p170, %s167, 7
        %s172 = smul.addr %s169, 8
        %s173 = sadd.s32 %s171, %s172
        %s174 = smul.addr %s173, 8
        %s175 = scalar_lea.vmem %s0, %s174
        %p176 = pneg %p52
        %p177 = pneg %p49
        %p178 = pneg %p73
        %p179 = pneg %p70
        %p180 = pneg %p94
        %p181 = pneg %p91
        %p182 = pneg %p122
        %p183 = pneg %p119
        %s184 = sand.u32 %s109, 1
        %s185 = scalar_lea.sflag [#allocation3], %s184
        %s186 = sand.u32 %s109, 1
        %s187 = smul.addr %s186, 64
        %s188 = scalar_lea.vmem [#allocation2], %s187
        %s189 = smul.u32 8, %s22
        %p190 = scmp.lt.s32.totalorder %s21, 1
        %s191 = scalar_select %p190, %s21, 1
        %p192 = scmp.lt.s32.totalorder %s189, 7
        %s193 = scalar_select %p192, %s189, 7
        %s194 = smul.addr %s191, 8
        %s195 = sadd.s32 %s193, %s194
        %s196 = smul.addr %s195, 8
        %s197 = scalar_lea.vmem %s0, %s196
        %s198 = smul.u32 8, %s22
        %s199 = smul.u32 8, %s22
        %v200 = vld [vmem:[%s197] sm:$0xff]
        %v201 = vld [vmem:[%s197 + $0x8] sm:$0xff]
        %v202 = vld [vmem:[%s197 + $0x10] sm:$0xff]
        %v203 = vld [vmem:[%s197 + $0x18] sm:$0xff]
        %v204 = vld [vmem:[%s197 + $0x20] sm:$0xff]
        %v205 = vld [vmem:[%s197 + $0x28] sm:$0xff]
        %v206 = vld [vmem:[%s197 + $0x30] sm:$0xff]
        %v207 = vld [vmem:[%s197 + $0x38] sm:$0xff]
        %v208 = vld [vmem:[%s1] sm:$0xff]
        %v209 = vld [vmem:[%s1 + $0x8] sm:$0xff]
        %v210 = vld [vmem:[%s1 + $0x10] sm:$0xff]
        %v211 = vld [vmem:[%s1 + $0x18] sm:$0xff]
        %v212 = vld [vmem:[%s1 + $0x20] sm:$0xf]
        %v213 = vld [vmem:[%s2] sm:$0x1]
        %v215 = vlaneseq
        %v216 = vshrl.u32 %v215, 7
        %v217 = vsub.s32 0, %v216
        %v218 = vrot.slane %v213, %v217
        %vm220 = vcmask 293888
        %v222 = vsel %vm220, %v200, 0
        %v225 = vsel %vm220, %v201, 0
        %v228 = vsel %vm220, %v202, 0
        %v231 = vsel %vm220, %v203, 0
        %v234 = vsel %vm220, %v204, 0
        %v237 = vsel %vm220, %v205, 0
        %v240 = vsel %vm220, %v206, 0
        %v243 = vsel %vm220, %v207, 0
        %vm245 = vcmask 1043456
        %v247 = vsel %vm245, %v212, 0
        %249 = vmatprep.subr.mxu0 0.0
        %250 = vmatpush1.msra.mxu0 %v208
        %251 = vmatprep.subr.mxu0 0.0
        %252 = vmatpush1.msra.mxu0 %v209
        %253 = vmatprep.subr.mxu0 0.0
        %254 = vmatpush1.msra.mxu0 %v210
        %255 = vmatprep.subr.mxu0 0.0
        %256 = vmatpush1.msra.mxu0 %v211
        %257 = vmatprep.subr.mxu0 0.0
        %258 = vmatpush1.msra.mxu0 %v247
        %259 = vmatprep.subr.mxu0 0.0
        %260 = vmatpush1.msra.mxu0 0.0
        %261 = vmatprep.subr.mxu0 0.0
        %262 = vmatpush1.msra.mxu0 0.0
        %263 = vmatprep.subr.mxu0 0.0
        %264 = vmatpush1.msra.mxu0 0.0
        %265 = vmatprep.subr.mxu0 0.0
        %266 = vmatpush1.msra.mxu0 0.0
        %267 = vmatprep.subr.mxu0 0.0
        %268 = vmatpush1.msra.mxu0 0.0
        %269 = vmatprep.subr.mxu0 0.0
        %270 = vmatpush1.msra.mxu0 0.0
        %271 = vmatprep.subr.mxu0 0.0
        %272 = vmatpush1.msra.mxu0 0.0
        %273 = vmatprep.subr.mxu0 0.0
        %274 = vmatpush1.msra.mxu0 0.0
        %275 = vmatprep.subr.mxu0 0.0
        %276 = vmatpush1.msra.mxu0 0.0
        %277 = vmatprep.subr.mxu0 0.0
        %278 = vmatpush1.msra.mxu0 0.0
        %279 = vmatprep.subr.mxu0 0.0
        %280 = vmatpush1.msra.mxu0 0.0
        %281 = vmatprep.subr.mxu0 0.0
        %282 = vmatpush1.msra.mxu0 0.0
        %283 = vmatprep.subr.mxu0 0.0
        %284 = vmatpush1.msra.mxu0 0.0
        %285 = vmatprep.subr.mxu0 0.0
        %286 = vmatpush1.msra.mxu0 0.0
        %287 = vmatprep.subr.mxu0 0.0
        %288 = vmatpush1.msra.mxu0 0.0
        %289 = vmatprep.subr.mxu0 0.0
        %290 = vmatpush1.msra.mxu0 0.0
        %291 = vmatprep.subr.mxu0 0.0
        %292 = vmatpush1.msra.mxu0 0.0
        %293 = vmatprep.subr.mxu0 0.0
        %294 = vmatpush1.msra.mxu0 0.0
        %295 = vmatprep.subr.mxu0 0.0
        %296 = vmatpush1.msra.mxu0 0.0
        %297 = vmatprep.subr.mxu0 0.0
        %298 = vmatpush1.msra.mxu0 0.0
        %299 = vmatprep.subr.mxu0 0.0
        %300 = vmatpush1.msra.mxu0 0.0
        %301 = vmatprep.subr.mxu0 0.0
        %302 = vmatpush1.msra.mxu0 0.0
        %303 = vmatprep.subr.mxu0 0.0
        %304 = vmatpush1.msra.mxu0 0.0
        %305 = vmatprep.subr.mxu0 0.0
        %306 = vmatpush1.msra.mxu0 0.0
        %307 = vmatprep.subr.mxu0 0.0
        %308 = vmatpush1.msra.mxu0 0.0
        %309 = vmatprep.subr.mxu0 0.0
        %310 = vmatpush1.msra.mxu0 0.0
        %311 = vmatprep.subr.mxu0 0.0
        %312 = vmatpush1.msra.mxu0 0.0
        %313 = vmatprep.mubr.f32.mxu0 0.0
        %314 = vmatmul.mubr.f32.gmra.mrb[0].mxu0 %v222
        %v315 = vpop.f32.mrb[0].mxu0
        %v316 = vadd.f32 %v218, %v315
        %v317 = vpop.f32.mrb[0].mxu0
        %318 = vmatprep.mubr.f32.mxu0 0.0
        %319 = vmatmul.mubr.f32.gmra.mrb[0].mxu0 %v225
        %v320 = vpop.f32.mrb[0].mxu0
        %v321 = vadd.f32 %v218, %v320
        %v322 = vpop.f32.mrb[0].mxu0
        %323 = vmatprep.mubr.f32.mxu0 0.0
        %324 = vmatmul.mubr.f32.gmra.mrb[0].mxu0 %v228
        %v325 = vpop.f32.mrb[0].mxu0
        %v326 = vadd.f32 %v218, %v325
        %v327 = vpop.f32.mrb[0].mxu0
        %328 = vmatprep.mubr.f32.mxu0 0.0
        %329 = vmatmul.mubr.f32.gmra.mrb[0].mxu0 %v231
        %v330 = vpop.f32.mrb[0].mxu0
        %v331 = vadd.f32 %v218, %v330
        %v332 = vpop.f32.mrb[0].mxu0
        %333 = vmatprep.mubr.f32.mxu0 0.0
        %334 = vmatmul.mubr.f32.gmra.mrb[0].mxu0 %v234
        %v335 = vpop.f32.mrb[0].mxu0
        %v336 = vadd.f32 %v218, %v335
        %v337 = vpop.f32.mrb[0].mxu0
        %338 = vmatprep.mubr.f32.mxu0 0.0
        %339 = vmatmul.mubr.f32.gmra.mrb[0].mxu0 %v237
        %v340 = vpop.f32.mrb[0].mxu0
        %v341 = vadd.f32 %v218, %v340
        %v342 = vpop.f32.mrb[0].mxu0
        %343 = vmatprep.mubr.f32.mxu0 0.0
        %344 = vmatmul.mubr.f32.gmra.mrb[0].mxu0 %v240
        %v345 = vpop.f32.mrb[0].mxu0
        %v346 = vadd.f32 %v218, %v345
        %v347 = vpop.f32.mrb[0].mxu0
        %348 = vmatprep.mubr.f32.mxu0 0.0
        %349 = vmatmul.mubr.f32.gmra.mrb[0].mxu0 %v243
        %v350 = vpop.f32.mrb[0].mxu0
        %v351 = vadd.f32 %v218, %v350
        %v352 = vpop.f32.mrb[0].mxu0
        %353 = vdwg.mxu0
        %vm354 = vcmp.ge.f32.partialorder %v316, 0.0
        %vm355 = vcmp.ge.f32.partialorder %v321, 0.0
        %vm356 = vcmp.ge.f32.partialorder %v326, 0.0
        %vm357 = vcmp.ge.f32.partialorder %v331, 0.0
        %vm358 = vcmp.ge.f32.partialorder %v336, 0.0
        %vm359 = vcmp.ge.f32.partialorder %v341, 0.0
        %vm360 = vcmp.ge.f32.partialorder %v346, 0.0
        %vm361 = vcmp.ge.f32.partialorder %v351, 0.0
        %v362 = vmul.f32 %v316, 0.01
        %v363 = vmul.f32 %v321, 0.01
        %v364 = vmul.f32 %v326, 0.01
        %v365 = vmul.f32 %v331, 0.01
        %v366 = vmul.f32 %v336, 0.01
        %v367 = vmul.f32 %v341, 0.01
        %v368 = vmul.f32 %v346, 0.01
        %v369 = vmul.f32 %v351, 0.01
        %v370 = vsel %vm354, %v316, %v362
        %v371 = vsel %vm355, %v321, %v363
        %v372 = vsel %vm356, %v326, %v364
        %v373 = vsel %vm357, %v331, %v365
        %v374 = vsel %vm358, %v336, %v366
        %v375 = vsel %vm359, %v341, %v367
        %v376 = vsel %vm360, %v346, %v368
        %v377 = vsel %vm361, %v351, %v369
        %378 = vst [vmem:[%s188] sm:$0xff] %v370
        %379 = vst [vmem:[%s188 + $0x8] sm:$0xff] %v371
        %380 = vst [vmem:[%s188 + $0x10] sm:$0xff] %v372
        %381 = vst [vmem:[%s188 + $0x18] sm:$0xff] %v373
        %382 = vst [vmem:[%s188 + $0x20] sm:$0xff] %v374
        %383 = vst [vmem:[%s188 + $0x28] sm:$0xff] %v375
        %384 = vst [vmem:[%s188 + $0x30] sm:$0xff] %v376
        %385 = vst [vmem:[%s188 + $0x38] sm:$0xff] %v377
        %s386 = sand.u32 %s109, 1
        %s387 = scalar_lea.sflag [#allocation3], %s386
        %s388 = sand.u32 %s109, 1
        %s389 = smul.addr %s388, 64
        %s390 = scalar_lea.vmem [#allocation2], %s389
        // Predicated region
        $region33: #{tpu_custom_call.1} parent=31 // pred_check
          %p391 = pneg %p119
        $region34: #{tpu_custom_call.1} parent=31 // pred_check_branch
          %393 = sbr.rel (%p391) target = $region36
        $region35: #{tpu_custom_call.1} parent=31 // pred_region
          %s394 = smul.u32 8, %s22
          %s396 = ssub.s32 1024, 1024
          %397 = vsyncadd %s387, %s396
          %s398 = smul.addr %s394, 2
          %s399 = sadd.s32 %s21, %s398
          %s400 = smul.addr %s399, 128
          %s401 = scalar_lea.hbm %s3, %s400
          %s402 = sshll.u32 %s390, 4
          %s403 = int_to_ptr.vmem [resolvable:$true] %s402
          %408 = dma.vmem_to_hbm [thread:$0]  %s403, 1024, %s401, %s387, 128, 256, 8
        $region36: #{tpu_custom_call.1} parent=31 // pred_fallthru
          _
      $region32: #{tpu_custom_call.1} parent=5 // pred_fallthru
        _
      %p409 = scmp.le.s32.totalorder 2, %s12
      // Predicated region
      $region37: #{tpu_custom_call.1} parent=5 // pred_check
        %p410 = pneg %p409
      $region38: #{tpu_custom_call.1} parent=5 // pred_check_branch
        %412 = sbr.rel (%p410) target = $region40
      $region39: #{tpu_custom_call.1} parent=5 // pred_region
        %s413 = ssub.s32 %s12, 2
        // Predicated region
        $region41: #{tpu_custom_call.1} parent=39 // pred_check
          %p414 = pneg %p125
        $region42: #{tpu_custom_call.1} parent=39 // pred_check_branch
          %416 = sbr.rel (%p414) target = $region44
        $region43: #{tpu_custom_call.1} parent=39 // pred_region
          %s417 = sand.u32 %s110, 1
          %s418 = scalar_lea.sflag [#allocation3], %s417
          %s419 = sand.u32 %s110, 1
          %s420 = smul.addr %s419, 64
          %s421 = scalar_lea.vmem [#allocation2], %s420
          %422 = dma.done %s418, 1024
        $region44: #{tpu_custom_call.1} parent=39 // pred_fallthru
          _
      $region40: #{tpu_custom_call.1} parent=5 // pred_fallthru
        _
    $region6: #{tpu_custom_call.1} parent=1 // loop_footer
      %s16 = sadd.s32 1, %s12
    $region7: #{tpu_custom_call.1} parent=1 // loop_footer_branch
      %11 = sbr.rel target = $region3
    $region8: #{tpu_custom_call.1} parent=1 // loop_exit
      _
    %423 = vsyncpa [#allocation3], 1
    %s424 = scalar_lea.sflag [#allocation3], 1
    %425 = vsyncpa %s424, 1

</llo_original>
